<compile_context>
chip_gen: v7x
topology: tpu7x:2x2x1
jax: 0.10.0
libtpu: 0.0.40
codegen_flags: <defaults>
</compile_context>

<pallas_src>
import functools
import math

import jax
import jax.numpy as jnp
from jax import lax
from jax.experimental import pallas as pl
from jax.experimental.pallas import tpu as pltpu

SINE_FACTOR = 30.0
LN_EPS = 1e-5
MATMUL_DTYPE = jnp.bfloat16   # MXU operand dtype; accumulation / elementwise stay f32
OUT_LANE_PAD = 128            # pad the output features to a lane-dense width


# ------------------------------ fused kernel -------------------------------- #

def _fused_mlp_kernel(*refs, program, n_entries, eps):
    """Whole-network forward for one batch tile.

    refs = (data_ref, *param_refs, out_ref).  `program` is a static tuple of
    ops (all indices refer into param_refs, sine factor / gamma / beta are
    pre-folded into the weights):
      ('linear_sine', iw, ib)
      ('assemble', subset_size)
      ('ln_linear_sine', iw, ib, residual, alpha)
      ('pool_linear', iw, ib)
    """
    data_ref, out_ref = refs[0], refs[-1]
    param_refs = refs[1:-1]

    x3 = data_ref[...].astype(jnp.float32)          # (bt, n_entries, f_in)
    bt = x3.shape[0]
    x = x3.reshape(bt * n_entries, x3.shape[-1])    # 2D working slab, f32

    def mm(z, iw, ib):
        # MXU-dtype operands (as prepared), f32 accumulate, f32 bias add.
        w = param_refs[iw][...]
        b = param_refs[ib][...]
        return jnp.dot(z.astype(w.dtype), w,
                       preferred_element_type=jnp.float32) + b

    for op in program:
        kind = op[0]

        if kind == 'linear_sine':                   # embedding: Linear + sine
            x = jnp.sin(mm(x, op[1], op[2]))        # factor folded into W/b

        elif kind == 'assemble':                    # subset roll-and-concat
            ss = op[1]
            f = x.shape[-1]
            y3 = x.reshape(bt, n_entries, f)
            pieces = []
            for i in range(ss):                     # O(ss) ops, batch-vectorized
                s = i % n_entries
                if s == 0:
                    pieces.append(y3)
                else:
                    # torch.roll(x, s, dims=1): out[:, j] = in[:, (j - s) % n]
                    pieces.append(jnp.concatenate(
                        [y3[:, n_entries - s:, :], y3[:, :n_entries - s, :]],
                        axis=1))
            y3 = pieces[0] if ss == 1 else jnp.concatenate(pieces, axis=-1)
            x = y3.reshape(bt * n_entries, ss * f)

        elif kind == 'ln_linear_sine':              # [Res] LayerNorm + Linear + sine
            iw, ib, residual, alpha = op[1:]
            k = x.shape[-1]
            # single-pass LayerNorm statistics, f32 (inputs are post-sine, bounded)
            mu = jnp.sum(x, axis=-1, keepdims=True) * (1.0 / k)
            msq = jnp.sum(x * x, axis=-1, keepdims=True) * (1.0 / k)
            var = msq - mu * mu
            z = (x - mu) * lax.rsqrt(var + eps)     # gamma/beta folded into W/b
            h = jnp.sin(mm(z, iw, ib))              # sine factor folded into W/b
            if not residual:
                x = h
            elif alpha == 1.0:                      # static: skip the scale
                x = x + h
            elif alpha == 0.0:                      # rezero at init
                x = x
            else:
                x = x + alpha * h

        elif kind == 'pool_linear':                 # mean over entries + output Linear
            f = x.shape[-1]
            pooled = jnp.sum(x.reshape(bt, n_entries, f), axis=1) * (1.0 / n_entries)
            out_ref[...] = mm(pooled, op[1], op[2])  # (bt, out_pad), lane-dense

        else:
            raise ValueError(f"unknown program op: {kind}")


# --------------------------- wrapper / param prep ---------------------------- #

def _const_index_map(ndim):
    zeros = (0,) * ndim
    return lambda i: zeros


def prepare_fused_params(params, *, sine_factor=SINE_FACTOR,
                         matmul_dtype=MATMUL_DTYPE, out_pad_to=OUT_LANE_PAD):
    """Pre-transpose weights to (K, N), fold gamma/beta and the sine factor
    into W/b (in f32, THEN cast the folded weight to `matmul_dtype`), pad the
    output linear to a lane-dense width, and build the static layer program."""
    flat, specs, program = [], [], []

    def add(arr):
        arr = jnp.asarray(arr)
        flat.append(arr)
        # Constant index map: weights are fully resident across grid steps.
        specs.append(pl.BlockSpec(arr.shape, _const_index_map(arr.ndim)))
        return len(flat) - 1

    factor = float(sine_factor)

    for (w, b) in params['embed']:
        wt = jnp.asarray(w, jnp.float32).T * factor               # (K, N), factor folded
        bb = (jnp.asarray(b, jnp.float32) * factor).reshape(1, -1)
        program.append(('linear_sine', add(wt.astype(matmul_dtype)), add(bb)))

    for solver in params['solvers']:
        program.append(('assemble', int(solver['subset_size'])))
        for layer in solver['layers']:
            g = jnp.asarray(layer['gamma'], jnp.float32)
            be = jnp.asarray(layer['beta'], jnp.float32)
            wt = jnp.asarray(layer['w'], jnp.float32).T           # (K, N)
            b = jnp.asarray(layer['b'], jnp.float32)
            w_f = factor * (g[:, None] * wt)                      # fold in f32
            b_f = (factor * (be @ wt + b)).reshape(1, -1)
            # TODO(synk): rezero's learnable re_alpha is baked in as its (static)
            # init value; pass it as a (1,1) input if it must stay trainable.
            program.append(('ln_linear_sine',
                            add(w_f.astype(matmul_dtype)), add(b_f),
                            layer['kind'] == 'res', float(layer['alpha'])))

    out_w = jnp.asarray(params['out_w'], jnp.float32).T           # (K, out_f)
    out_b = jnp.asarray(params['out_b'], jnp.float32).reshape(1, -1)
    out_f = out_w.shape[-1]
    out_pad = max(out_pad_to, ((out_f + out_pad_to - 1) // out_pad_to) * out_pad_to)
    if out_pad != out_f:                                          # lane-dense output
        out_w = jnp.pad(out_w, ((0, 0), (0, out_pad - out_f)))
        out_b = jnp.pad(out_b, ((0, 0), (0, out_pad - out_f)))
    program.append(('pool_linear', add(out_w.astype(matmul_dtype)), add(out_b)))

    meta = dict(out_features=int(out_f), out_padded=int(out_pad))
    return tuple(program), flat, specs, meta


def _cdiv(a, b):
    return -(-a // b)


def _device_policy():
    """Per-generation tiling/VMEM policy (v7x: 2 TCs / 64 MiB; v5e/v6e: 1 TC)."""
    kind = ""
    try:
        dev = jax.devices()[0]
        if dev.platform == "tpu":
            kind = (dev.device_kind or "").lower()
    except Exception:
        pass
    if "v7" in kind or "7x" in kind:
        return dict(min_grid_steps=2, prefer_even=True, vmem_limit=48 * 1024 * 1024)
    if "v6" in kind:
        return dict(min_grid_steps=1, prefer_even=False, vmem_limit=96 * 1024 * 1024)
    if "v5 lite" in kind or "v5e" in kind or "v5litepod" in kind:
        return dict(min_grid_steps=1, prefer_even=False, vmem_limit=64 * 1024 * 1024)
    # unknown / other: conservative cap, single-core assumptions
    return dict(min_grid_steps=1, prefer_even=False, vmem_limit=32 * 1024 * 1024)


def _pick_batch_tile(batch, n_entries, *, max_rows, min_grid_steps, prefer_even):
    """Largest batch tile with <= max_rows activation rows per grid step.
    Non-divisor batches are handled by padding to bt * grid in the wrapper."""
    cap = max(1, max_rows // max(1, n_entries))
    bt = max(1, min(batch, cap))
    if min_grid_steps > 1 and batch >= min_grid_steps:
        bt = min(bt, _cdiv(batch, min_grid_steps))   # give every TensorCore work
    grid = _cdiv(batch, bt)
    if prefer_even and grid > 1 and grid % 2:        # load-balance v7x's 2 TCs
        bt_alt = _cdiv(batch, grid + 1)
        if bt_alt >= 1 and _cdiv(batch, bt_alt) % 2 == 0:
            bt = bt_alt
            grid = _cdiv(batch, bt)
    return bt, grid


def mlp_forward(prepped, data, *, max_rows_per_step=2048):
    """Single fused pallas_call for the whole network."""
    program, flat, specs, meta = prepped
    B, N, F = data.shape
    pol = _device_policy()
    bt, grid = _pick_batch_tile(B, N, max_rows=max_rows_per_step,
                                min_grid_steps=pol['min_grid_steps'],
                                prefer_even=pol['prefer_even'])
    B_pad = bt * grid

    x = data.astype(jnp.float32)
    if B_pad != B:                                  # pad instead of degrading to bt=1
        x = jnp.pad(x, ((0, B_pad - B), (0, 0), (0, 0)))

    out_pad = meta['out_padded']
    kernel = functools.partial(_fused_mlp_kernel, program=program,
                               n_entries=N, eps=LN_EPS)

    out = pl.pallas_call(
        kernel,
        out_shape=jax.ShapeDtypeStruct((grid, bt, out_pad), jnp.float32),
        grid=(grid,),
        in_specs=[pl.BlockSpec((bt, N, F), lambda i: (i, 0, 0))] + specs,
        # leading grid dim squeezed out; per-step block is (bt, 128) lane-dense
        out_specs=pl.BlockSpec((None, bt, out_pad), lambda i: (i, 0, 0)),
        compiler_params=pltpu.CompilerParams(
            dimension_semantics=("parallel",),       # megacore-shard the batch grid
            vmem_limit_bytes=pol['vmem_limit']),
    )(x, *flat)

    return out.reshape(B_pad, out_pad)[:B, :meta['out_features']]


# -------------------------- parameter construction -------------------------- #

def _init_linear(key, in_f, out_f, *, first_layer=False, use_sine_init=True):
    kw, kb = jax.random.split(key)
    if use_sine_init:
        if first_layer:
            wrange = 1.0 / in_f                       # first_layer_sine_init
        else:
            wrange = math.sqrt(6.0 / in_f) / 30.0     # sine_init
    else:
        wrange = 1.0 / math.sqrt(in_f)                # torch default
    w = jax.random.uniform(kw, (out_f, in_f), jnp.float32, -wrange, wrange)
    bbound = 1.0 / math.sqrt(in_f)                    # torch default bias init
    b = jax.random.uniform(kb, (out_f,), jnp.float32, -bbound, bbound)
    return w, b


def _init_layernorm(key, feats, *, use_sine_init=True):
    if use_sine_init:  # self.apply(sine_init) also hits LayerNorm.weight
        vr = math.sqrt(6.0 / feats) / 30.0
        gamma = jax.random.uniform(key, (feats,), jnp.float32, -vr, vr)
    else:
        gamma = jnp.ones((feats,), jnp.float32)
    beta = jnp.zeros((feats,), jnp.float32)
    return gamma, beta


def build_mlp_params(key, in_features, out_features, embedding_features,
                     subset_config, *, rezero=False, use_sine_init=True):
    params = {'embed': [], 'solvers': []}
    in_f = in_features
    for li, out_f in enumerate(embedding_features):
        key, sub = jax.random.split(key)
        params['embed'].append(_init_linear(sub, in_f, out_f,
                                            first_layer=(li == 0),
                                            use_sine_init=use_sine_init))
        in_f = out_f
    for config in subset_config:
        subset_size, features = config[0], config[1:]
        layers = []
        cur = in_f * subset_size
        for out_f in features:
            key, k1, k2 = jax.random.split(key, 3)
            gamma, beta = _init_layernorm(k1, cur, use_sine_init=use_sine_init)
            w, b = _init_linear(k2, cur, out_f, use_sine_init=use_sine_init)
            kind = 'res' if cur == out_f else 'lls'
            alpha = 0.0 if (kind == 'res' and rezero) else 1.0
            layers.append(dict(kind=kind, gamma=gamma, beta=beta, w=w, b=b,
                               alpha=alpha))
            cur = out_f
        params['solvers'].append(dict(subset_size=subset_size, layers=layers))
        in_f = config[-1]
    key, sub = jax.random.split(key)
    params['out_w'], params['out_b'] = _init_linear(sub, in_f, out_features,
                                                    use_sine_init=use_sine_init)
    return params


# ----------------------------- pure-JAX references --------------------------- #

def mlp_reference(params, data, *, sine_factor=SINE_FACTOR):
    """Faithful f32 implementation of the PyTorch module (unfolded weights)."""
    def linear(x, w, b):
        return x @ jnp.asarray(w, jnp.float32).T + jnp.asarray(b, jnp.float32)

    def ln(x, g, bt):
        mu = x.mean(-1, keepdims=True)
        var = ((x - mu) ** 2).mean(-1, keepdims=True)
        return (x - mu) / jnp.sqrt(var + LN_EPS) * g + bt

    x = data.astype(jnp.float32)
    for (w, b) in params['embed']:
        x = jnp.sin(sine_factor * linear(x, w, b))
    for solver in params['solvers']:
        ss = solver['subset_size']
        x = jnp.concatenate([jnp.roll(x, i, axis=1) for i in range(ss)], axis=-1)
        for layer in solver['layers']:
            h = jnp.sin(sine_factor * linear(ln(x, layer['gamma'], layer['beta']),
                                             layer['w'], layer['b']))
            x = x + layer['alpha'] * h if layer['kind'] == 'res' else h
    return linear(x.mean(axis=1), params['out_w'], params['out_b'])


def reference_from_prepped(prepped, data):
    """Walks the kernel's static program with pure jnp ops and the same folded
    (and possibly bf16-cast) weights — mirrors the kernel's numerics policy."""
    program, flat, _, meta = prepped
    x = data.astype(jnp.float32)                     # (B, N, F)

    def mm(z, iw, ib):
        w, b = flat[iw], flat[ib]
        return jnp.dot(z.astype(w.dtype), w, preferred_element_type=jnp.float32) + b

    for op in program:
        kind = op[0]
        if kind == 'linear_sine':
            x = jnp.sin(mm(x, op[1], op[2]))
        elif kind == 'assemble':
            ss = op[1]
            x = jnp.concatenate([jnp.roll(x, i, axis=1) for i in range(ss)], axis=-1)
        elif kind == 'ln_linear_sine':
            iw, ib, residual, alpha = op[1:]
            mu = x.mean(-1, keepdims=True)
            var = ((x - mu) ** 2).mean(-1, keepdims=True)
            z = (x - mu) / jnp.sqrt(var + LN_EPS)
            h = jnp.sin(mm(z, iw, ib))
            x = x + alpha * h if residual else h
        elif kind == 'pool_linear':
            x = mm(x.mean(axis=1), op[1], op[2])[:, :meta['out_features']]
    return x


# ---------------------------------- main ------------------------------------- #

if __name__ == "__main__":
    key = jax.random.PRNGKey(0)
    k_data, k_params = jax.random.split(key)

    # small config consistent with the module's forward:
    in_features, out_features = 4, 3
    embedding_features = [32]
    subset_config = [[2, 48, 48]]   # subset_size=2 -> 64 -> LN/Lin/Sine -> ResLinear
    B, NUM_ENTRIES = 2, 8

    data = jax.random.normal(k_data, (B, NUM_ENTRIES, in_features), jnp.float32)
    params = build_mlp_params(k_params, in_features, out_features,
                              embedding_features, subset_config,
                              rezero=False, use_sine_init=True)

    # 1) validate the gamma/beta/sine-factor fold itself (pure JAX, f32 weights)
    prepped_f32 = prepare_fused_params(params, matmul_dtype=jnp.float32)
    ref_exact = mlp_reference(params, data)
    ref_fold = reference_from_prepped(prepped_f32, data)
    assert jnp.allclose(ref_fold, ref_exact, atol=2e-3, rtol=2e-3), (ref_fold, ref_exact)

    # 2) run the fused Pallas kernel (bf16 MXU operands, f32 accumulate/elementwise)
    prepped = prepare_fused_params(params, matmul_dtype=MATMUL_DTYPE)
    out = jax.block_until_ready(mlp_forward(prepped, data))
    assert out.shape == (B, out_features), out.shape

    ref = reference_from_prepped(prepped, data)
    assert jnp.allclose(out, ref, atol=2e-3, rtol=2e-3), (out, ref)

    print("KERNEL_OK")
</pallas_src>

<mosaic_0001>
module attributes {stable_mosaic.version = 11 : i64} {
  func.func @_fused_mlp_kernel(%arg0: i32, %arg1: memref<2x8x4xf32, #tpu.memory_space<vmem>>, %arg2: memref<4x32xbf16, #tpu.memory_space<vmem>>, %arg3: memref<1x32xf32, #tpu.memory_space<vmem>>, %arg4: memref<64x48xbf16, #tpu.memory_space<vmem>>, %arg5: memref<1x48xf32, #tpu.memory_space<vmem>>, %arg6: memref<48x48xbf16, #tpu.memory_space<vmem>>, %arg7: memref<1x48xf32, #tpu.memory_space<vmem>>, %arg8: memref<48x128xbf16, #tpu.memory_space<vmem>>, %arg9: memref<1x128xf32, #tpu.memory_space<vmem>>, %arg10: memref<1x2x128xf32, #tpu.memory_space<vmem>>) attributes {dimension_semantics = [#tpu.dimension_semantics<parallel>], iteration_bounds = array<i64: 1>, scalar_prefetch = 0 : i64, scratch_operands = 0 : i64, tpu.core_type = #tpu.core_type<tc>, window_params = [{transform_indices = @transform_0, window_bounds = array<i64: 2, 8, 4>}, {pipeline_mode = #tpu.pipeline_mode<synchronous>, transform_indices = @transform_1, window_bounds = array<i64: 4, 32>}, {pipeline_mode = #tpu.pipeline_mode<synchronous>, transform_indices = @transform_2, window_bounds = array<i64: 1, 32>}, {pipeline_mode = #tpu.pipeline_mode<synchronous>, transform_indices = @transform_3, window_bounds = array<i64: 64, 48>}, {pipeline_mode = #tpu.pipeline_mode<synchronous>, transform_indices = @transform_4, window_bounds = array<i64: 1, 48>}, {pipeline_mode = #tpu.pipeline_mode<synchronous>, transform_indices = @transform_5, window_bounds = array<i64: 48, 48>}, {pipeline_mode = #tpu.pipeline_mode<synchronous>, transform_indices = @transform_6, window_bounds = array<i64: 1, 48>}, {pipeline_mode = #tpu.pipeline_mode<synchronous>, transform_indices = @transform_7, window_bounds = array<i64: 48, 128>}, {pipeline_mode = #tpu.pipeline_mode<synchronous>, transform_indices = @transform_8, window_bounds = array<i64: 1, 128>}, {transform_indices = @transform_9, window_bounds = array<i64: 1, 2, 128>}]} {
    %c0 = arith.constant 0 : index
    %c0_0 = arith.constant 0 : index
    %c0_1 = arith.constant 0 : index
    %0 = vector.load %arg1[%c0, %c0_0, %c0_1] : memref<2x8x4xf32, #tpu.memory_space<vmem>>, vector<2x8x4xf32>
    %1 = vector.shape_cast %0 : vector<2x8x4xf32> to vector<16x4xf32>
    %c0_2 = arith.constant 0 : index
    %c0_3 = arith.constant 0 : index
    %2 = vector.load %arg2[%c0_2, %c0_3] : memref<4x32xbf16, #tpu.memory_space<vmem>>, vector<4x32xbf16>
    %c0_4 = arith.constant 0 : index
    %c0_5 = arith.constant 0 : index
    %3 = vector.load %arg3[%c0_4, %c0_5] : memref<1x32xf32, #tpu.memory_space<vmem>>, vector<1x32xf32>
    %4 = arith.truncf %1 : vector<16x4xf32> to vector<16x4xbf16>
    %cst = arith.constant dense<0.000000e+00> : vector<16x32xf32>
    %5 = tpu.matmul %4, %2, %cst {dimension_numbers = #tpu.dot_dimension_numbers<[1], [0], [0], [1], [0, 0, 1, 1], [], []>} : vector<16x4xbf16>, vector<4x32xbf16>, vector<16x32xf32> -> vector<16x32xf32>
    %6 = vector.broadcast %3 : vector<1x32xf32> to vector<16x32xf32>
    %7 = arith.addf %5, %6 : vector<16x32xf32>
    %8 = math.sin %7 : vector<16x32xf32>
    %9 = vector.shape_cast %8 : vector<16x32xf32> to vector<2x8x32xf32>
    %10 = vector.extract_strided_slice %9 {offsets = [0, 7, 0], sizes = [2, 1, 32], strides = [1, 1, 1]} : vector<2x8x32xf32> to vector<2x1x32xf32>
    %11 = vector.extract_strided_slice %9 {offsets = [0, 0, 0], sizes = [2, 7, 32], strides = [1, 1, 1]} : vector<2x8x32xf32> to vector<2x7x32xf32>
    %12 = tpu.concatenate %10, %11 in 1 : vector<2x1x32xf32>, vector<2x7x32xf32> -> vector<2x8x32xf32>
    %13 = tpu.concatenate %9, %12 in 2 : vector<2x8x32xf32>, vector<2x8x32xf32> -> vector<2x8x64xf32>
    %14 = vector.shape_cast %13 : vector<2x8x64xf32> to vector<16x64xf32>
    %cst_6 = arith.constant dense<0.000000e+00> : vector<16xf32>
    %15 = vector.multi_reduction <add>, %14, %cst_6 [1] : vector<16x64xf32> to vector<16xf32>
    %16 = vector.shape_cast %15 : vector<16xf32> to vector<16x1xf32>
    %cst_7 = arith.constant 1.562500e-02 : f32
    %17 = vector.broadcast %cst_7 : f32 to vector<16x1xf32>
    %18 = arith.mulf %16, %17 : vector<16x1xf32>
    %19 = arith.mulf %14, %14 : vector<16x64xf32>
    %cst_8 = arith.constant dense<0.000000e+00> : vector<16xf32>
    %20 = vector.multi_reduction <add>, %19, %cst_8 [1] : vector<16x64xf32> to vector<16xf32>
    %21 = vector.shape_cast %20 : vector<16xf32> to vector<16x1xf32>
    %cst_9 = arith.constant 1.562500e-02 : f32
    %22 = vector.broadcast %cst_9 : f32 to vector<16x1xf32>
    %23 = arith.mulf %21, %22 : vector<16x1xf32>
    %24 = arith.mulf %18, %18 : vector<16x1xf32>
    %25 = arith.subf %23, %24 : vector<16x1xf32>
    %26 = vector.broadcast %18 : vector<16x1xf32> to vector<16x64xf32>
    %27 = arith.subf %14, %26 : vector<16x64xf32>
    %cst_10 = arith.constant 9.99999974E-6 : f32
    %28 = vector.broadcast %cst_10 : f32 to vector<16x1xf32>
    %29 = arith.addf %25, %28 : vector<16x1xf32>
    %30 = math.rsqrt %29 : vector<16x1xf32>
    %31 = vector.broadcast %30 : vector<16x1xf32> to vector<16x64xf32>
    %32 = arith.mulf %27, %31 : vector<16x64xf32>
    %c0_11 = arith.constant 0 : index
    %c0_12 = arith.constant 0 : index
    %33 = vector.load %arg4[%c0_11, %c0_12] : memref<64x48xbf16, #tpu.memory_space<vmem>>, vector<64x48xbf16>
    %c0_13 = arith.constant 0 : index
    %c0_14 = arith.constant 0 : index
    %34 = vector.load %arg5[%c0_13, %c0_14] : memref<1x48xf32, #tpu.memory_space<vmem>>, vector<1x48xf32>
    %35 = arith.truncf %32 : vector<16x64xf32> to vector<16x64xbf16>
    %cst_15 = arith.constant dense<0.000000e+00> : vector<16x48xf32>
    %36 = tpu.matmul %35, %33, %cst_15 {dimension_numbers = #tpu.dot_dimension_numbers<[1], [0], [0], [1], [0, 0, 1, 1], [], []>} : vector<16x64xbf16>, vector<64x48xbf16>, vector<16x48xf32> -> vector<16x48xf32>
    %37 = vector.broadcast %34 : vector<1x48xf32> to vector<16x48xf32>
    %38 = arith.addf %36, %37 : vector<16x48xf32>
    %39 = math.sin %38 : vector<16x48xf32>
    %cst_16 = arith.constant dense<0.000000e+00> : vector<16xf32>
    %40 = vector.multi_reduction <add>, %39, %cst_16 [1] : vector<16x48xf32> to vector<16xf32>
    %41 = vector.shape_cast %40 : vector<16xf32> to vector<16x1xf32>
    %cst_17 = arith.constant 0.020833334 : f32
    %42 = vector.broadcast %cst_17 : f32 to vector<16x1xf32>
    %43 = arith.mulf %41, %42 : vector<16x1xf32>
    %44 = arith.mulf %39, %39 : vector<16x48xf32>
    %cst_18 = arith.constant dense<0.000000e+00> : vector<16xf32>
    %45 = vector.multi_reduction <add>, %44, %cst_18 [1] : vector<16x48xf32> to vector<16xf32>
    %46 = vector.shape_cast %45 : vector<16xf32> to vector<16x1xf32>
    %cst_19 = arith.constant 0.020833334 : f32
    %47 = vector.broadcast %cst_19 : f32 to vector<16x1xf32>
    %48 = arith.mulf %46, %47 : vector<16x1xf32>
    %49 = arith.mulf %43, %43 : vector<16x1xf32>
    %50 = arith.subf %48, %49 : vector<16x1xf32>
    %51 = vector.broadcast %43 : vector<16x1xf32> to vector<16x48xf32>
    %52 = arith.subf %39, %51 : vector<16x48xf32>
    %cst_20 = arith.constant 9.99999974E-6 : f32
    %53 = vector.broadcast %cst_20 : f32 to vector<16x1xf32>
    %54 = arith.addf %50, %53 : vector<16x1xf32>
    %55 = math.rsqrt %54 : vector<16x1xf32>
    %56 = vector.broadcast %55 : vector<16x1xf32> to vector<16x48xf32>
    %57 = arith.mulf %52, %56 : vector<16x48xf32>
    %c0_21 = arith.constant 0 : index
    %c0_22 = arith.constant 0 : index
    %58 = vector.load %arg6[%c0_21, %c0_22] : memref<48x48xbf16, #tpu.memory_space<vmem>>, vector<48x48xbf16>
    %c0_23 = arith.constant 0 : index
    %c0_24 = arith.constant 0 : index
    %59 = vector.load %arg7[%c0_23, %c0_24] : memref<1x48xf32, #tpu.memory_space<vmem>>, vector<1x48xf32>
    %60 = arith.truncf %57 : vector<16x48xf32> to vector<16x48xbf16>
    %cst_25 = arith.constant dense<0.000000e+00> : vector<16x48xf32>
    %61 = tpu.matmul %60, %58, %cst_25 {dimension_numbers = #tpu.dot_dimension_numbers<[1], [0], [0], [1], [0, 0, 1, 1], [], []>} : vector<16x48xbf16>, vector<48x48xbf16>, vector<16x48xf32> -> vector<16x48xf32>
    %62 = vector.broadcast %59 : vector<1x48xf32> to vector<16x48xf32>
    %63 = arith.addf %61, %62 : vector<16x48xf32>
    %64 = math.sin %63 : vector<16x48xf32>
    %65 = arith.addf %39, %64 : vector<16x48xf32>
    %66 = vector.shape_cast %65 : vector<16x48xf32> to vector<2x8x48xf32>
    %cst_26 = arith.constant dense<0.000000e+00> : vector<2x48xf32>
    %67 = vector.multi_reduction <add>, %66, %cst_26 [1] : vector<2x8x48xf32> to vector<2x48xf32>
    %cst_27 = arith.constant 1.250000e-01 : f32
    %68 = vector.broadcast %cst_27 : f32 to vector<2x48xf32>
    %69 = arith.mulf %67, %68 : vector<2x48xf32>
    %c0_28 = arith.constant 0 : index
    %c0_29 = arith.constant 0 : index
    %70 = vector.load %arg8[%c0_28, %c0_29] : memref<48x128xbf16, #tpu.memory_space<vmem>>, vector<48x128xbf16>
    %c0_30 = arith.constant 0 : index
    %c0_31 = arith.constant 0 : index
    %71 = vector.load %arg9[%c0_30, %c0_31] : memref<1x128xf32, #tpu.memory_space<vmem>>, vector<1x128xf32>
    %72 = arith.truncf %69 : vector<2x48xf32> to vector<2x48xbf16>
    %cst_32 = arith.constant dense<0.000000e+00> : vector<2x128xf32>
    %73 = tpu.matmul %72, %70, %cst_32 {dimension_numbers = #tpu.dot_dimension_numbers<[1], [0], [0], [1], [0, 0, 1, 1], [], []>} : vector<2x48xbf16>, vector<48x128xbf16>, vector<2x128xf32> -> vector<2x128xf32>
    %74 = vector.broadcast %71 : vector<1x128xf32> to vector<2x128xf32>
    %75 = arith.addf %73, %74 : vector<2x128xf32>
    %c0_33 = arith.constant 0 : index
    %c0_34 = arith.constant 0 : index
    %c0_35 = arith.constant 0 : index
    %76 = vector.load %arg10[%c0_33, %c0_34, %c0_35] : memref<1x2x128xf32, #tpu.memory_space<vmem>>, vector<1x2x128xf32>
    %77 = vector.shape_cast %76 : vector<1x2x128xf32> to vector<2x128xf32>
    %78 = vector.shape_cast %75 : vector<2x128xf32> to vector<1x2x128xf32>
    tpu.vector_store %arg10[%c0_33, %c0_34, %c0_35], %78 {strides = array<i32>} : memref<1x2x128xf32, #tpu.memory_space<vmem>>, vector<1x2x128xf32>,
    return
  }
  func.func @transform_0(%arg0: i32) -> (i32, i32, i32) {
    %c0_i32 = arith.constant 0 : i32
    %c0_i32_0 = arith.constant 0 : i32
    %c0_i32_1 = arith.constant 0 : i32
    return %arg0, %c0_i32, %c0_i32_0 : i32, i32, i32
  }
  func.func @transform_1(%arg0: i32) -> (i32, i32) {
    %c0_i32 = arith.constant 0 : i32
    %c0_i32_0 = arith.constant 0 : i32
    %c0_i32_1 = arith.constant 0 : i32
    return %c0_i32, %c0_i32_0 : i32, i32
  }
  func.func @transform_2(%arg0: i32) -> (i32, i32) {
    %c0_i32 = arith.constant 0 : i32
    %c0_i32_0 = arith.constant 0 : i32
    %c0_i32_1 = arith.constant 0 : i32
    return %c0_i32, %c0_i32_0 : i32, i32
  }
  func.func @transform_3(%arg0: i32) -> (i32, i32) {
    %c0_i32 = arith.constant 0 : i32
    %c0_i32_0 = arith.constant 0 : i32
    %c0_i32_1 = arith.constant 0 : i32
    return %c0_i32, %c0_i32_0 : i32, i32
  }
  func.func @transform_4(%arg0: i32) -> (i32, i32) {
    %c0_i32 = arith.constant 0 : i32
    %c0_i32_0 = arith.constant 0 : i32
    %c0_i32_1 = arith.constant 0 : i32
    return %c0_i32, %c0_i32_0 : i32, i32
  }
  func.func @transform_5(%arg0: i32) -> (i32, i32) {
    %c0_i32 = arith.constant 0 : i32
    %c0_i32_0 = arith.constant 0 : i32
    %c0_i32_1 = arith.constant 0 : i32
    return %c0_i32, %c0_i32_0 : i32, i32
  }
  func.func @transform_6(%arg0: i32) -> (i32, i32) {
    %c0_i32 = arith.constant 0 : i32
    %c0_i32_0 = arith.constant 0 : i32
    %c0_i32_1 = arith.constant 0 : i32
    return %c0_i32, %c0_i32_0 : i32, i32
  }
  func.func @transform_7(%arg0: i32) -> (i32, i32) {
    %c0_i32 = arith.constant 0 : i32
    %c0_i32_0 = arith.constant 0 : i32
    %c0_i32_1 = arith.constant 0 : i32
    return %c0_i32, %c0_i32_0 : i32, i32
  }
  func.func @transform_8(%arg0: i32) -> (i32, i32) {
    %c0_i32 = arith.constant 0 : i32
    %c0_i32_0 = arith.constant 0 : i32
    %c0_i32_1 = arith.constant 0 : i32
    return %c0_i32, %c0_i32_0 : i32, i32
  }
  func.func @transform_9(%arg0: i32) -> (i32, i32, i32) {
    %c0_i32 = arith.constant 0 : i32
    %c0_i32_0 = arith.constant 0 : i32
    %c0_i32_1 = arith.constant 0 : i32
    return %arg0, %c0_i32, %c0_i32_0 : i32, i32, i32
  }
}

</mosaic_0001>

<llo_original>
// kernel: tpu_custom_call.1
$region0: #{tpu_custom_call.1}
  #allocation0 [shape = 'u32[]', space=smem, size = 0x4, offset = 0x4, fixed_abs, tag = 'smem constant byte address 0x4 - core index']
  #allocation1 [shape = 'u32[144,128]{1,0:T(1,128)}', space=vmem, size = 0x12000, scoped, tag = 'internal scratch']
  %s0 = inlined_call_operand.vmem [shape: f32[2,8,4], index: 0, kind: input, shape index: {}]
  %s1 = inlined_call_operand.vmem [shape: bf16[4,32], index: 1, kind: input, shape index: {}]
  %s2 = inlined_call_operand.vmem [shape: f32[1,32], index: 2, kind: input, shape index: {}]
  %s3 = inlined_call_operand.vmem [shape: bf16[64,48], index: 3, kind: input, shape index: {}]
  %s4 = inlined_call_operand.vmem [shape: f32[1,48], index: 4, kind: input, shape index: {}]
  %s5 = inlined_call_operand.vmem [shape: bf16[48,48], index: 5, kind: input, shape index: {}]
  %s6 = inlined_call_operand.vmem [shape: f32[1,48], index: 6, kind: input, shape index: {}]
  %s7 = inlined_call_operand.vmem [shape: bf16[48,128], index: 7, kind: input, shape index: {}]
  %s8 = inlined_call_operand.vmem [shape: f32[1,128], index: 8, kind: input, shape index: {}]
  %s9 = inlined_call_operand.hbm [shape: f32[1,2,128], index: 9, kind: output, shape index: {}]
  %s10 = sld [smem:[#allocation0]]
  $region46: #{tpu_custom_call.1} parent=0
    _
  %s12 = ssub.s32 1, %s10
  %s13 = scalar_select 0, %s12, %s10
  $region1: #{tpu_custom_call.1} parent=0
    #allocation2 [shape = 'u8[1024]{0}', space=vmem, size = 0x400, scoped, tag = 'output window, operand 0, single buffered']
    #allocation3 [shape = 's32[1]{0}', space=sflag, size = 0x4, scoped, tag = 'scoped memory for tpu_custom_call.1']
    %14 = vsyncpa [#allocation3], 0
    // Predicated region
    $region2: #{tpu_custom_call.1} parent=1 // pred_check
      _
    $region3: #{tpu_custom_call.1} parent=1 // pred_check_branch
      %16 = sbr.rel (0) target = $region5
    $region4: #{tpu_custom_call.1} parent=1 // pred_region
      _
    $region5: #{tpu_custom_call.1} parent=1 // pred_fallthru
      _
    // Predicated region
    $region6: #{tpu_custom_call.1} parent=1 // pred_check
      _
    $region7: #{tpu_custom_call.1} parent=1 // pred_check_branch
      %18 = sbr.rel (0) target = $region9
    $region8: #{tpu_custom_call.1} parent=1 // pred_region
      _
    $region9: #{tpu_custom_call.1} parent=1 // pred_fallthru
      _
    // Predicated region
    $region10: #{tpu_custom_call.1} parent=1 // pred_check
      _
    $region11: #{tpu_custom_call.1} parent=1 // pred_check_branch
      %20 = sbr.rel (0) target = $region13
    $region12: #{tpu_custom_call.1} parent=1 // pred_region
      _
    $region13: #{tpu_custom_call.1} parent=1 // pred_fallthru
      _
    // Predicated region
    $region14: #{tpu_custom_call.1} parent=1 // pred_check
      _
    $region15: #{tpu_custom_call.1} parent=1 // pred_check_branch
      %22 = sbr.rel (0) target = $region17
    $region16: #{tpu_custom_call.1} parent=1 // pred_region
      _
    $region17: #{tpu_custom_call.1} parent=1 // pred_fallthru
      _
    // Predicated region
    $region18: #{tpu_custom_call.1} parent=1 // pred_check
      _
    $region19: #{tpu_custom_call.1} parent=1 // pred_check_branch
      %24 = sbr.rel (0) target = $region21
    $region20: #{tpu_custom_call.1} parent=1 // pred_region
      _
    $region21: #{tpu_custom_call.1} parent=1 // pred_fallthru
      _
    // Predicated region
    $region22: #{tpu_custom_call.1} parent=1 // pred_check
      _
    $region23: #{tpu_custom_call.1} parent=1 // pred_check_branch
      %26 = sbr.rel (0) target = $region25
    $region24: #{tpu_custom_call.1} parent=1 // pred_region
      _
    $region25: #{tpu_custom_call.1} parent=1 // pred_fallthru
      _
    // Predicated region
    $region26: #{tpu_custom_call.1} parent=1 // pred_check
      _
    $region27: #{tpu_custom_call.1} parent=1 // pred_check_branch
      %28 = sbr.rel (0) target = $region29
    $region28: #{tpu_custom_call.1} parent=1 // pred_region
      _
    $region29: #{tpu_custom_call.1} parent=1 // pred_fallthru
      _
    // Predicated region
    $region30: #{tpu_custom_call.1} parent=1 // pred_check
      _
    $region31: #{tpu_custom_call.1} parent=1 // pred_check_branch
      %30 = sbr.rel (0) target = $region33
    $region32: #{tpu_custom_call.1} parent=1 // pred_region
      _
    $region33: #{tpu_custom_call.1} parent=1 // pred_fallthru
      _
    // Predicated region
    $region34: #{tpu_custom_call.1} parent=1 // pred_check
      _
    $region35: #{tpu_custom_call.1} parent=1 // pred_check_branch
      %32 = sbr.rel (0) target = $region37
    $region36: #{tpu_custom_call.1} parent=1 // pred_region
      _
    $region37: #{tpu_custom_call.1} parent=1 // pred_fallthru
      _
    %v34 = vld [vmem:[%s0] sm:$0xff]
    %v35 = vld [vmem:[%s0 + $0x8] sm:$0xff]
    %v36 = vld [vmem:[%s1] sm:$0x3]
    %v37 = vld [vmem:[%s2] sm:$0x1]
    %v38 = vpack.c.bf16 %v35, %v34
    %v40 = vlaneseq
    %v41 = vshrl.u32 %v40, 7
    %v42 = vsub.s32 0, %v41
    %v43 = vrot.slane %v37, %v42
    %vm45 = vcmask 31744
    %v47 = vsel %vm45, %v38, 0
    %vm49 = vcmask 1041408
    %v51 = vsel %vm49, %v36, 0
    %53 = vmatprep.subr.bf16.mxu0 0
    %54 = vmatpush1.bf16.msra.mxu0 %v51
    %55 = vmatprep.subr.bf16.mxu0 0
    %56 = vmatpush1.bf16.msra.mxu0 0
    %57 = vmatprep.subr.bf16.mxu0 0
    %58 = vmatpush1.bf16.msra.mxu0 0
    %59 = vmatprep.subr.bf16.mxu0 0
    %60 = vmatpush1.bf16.msra.mxu0 0
    %61 = vmatprep.subr.bf16.mxu0 0
    %62 = vmatpush1.bf16.msra.mxu0 0
    %63 = vmatprep.subr.bf16.mxu0 0
    %64 = vmatpush1.bf16.msra.mxu0 0
    %65 = vmatprep.subr.bf16.mxu0 0
    %66 = vmatpush1.bf16.msra.mxu0 0
    %67 = vmatprep.subr.bf16.mxu0 0
    %68 = vmatpush1.bf16.msra.mxu0 0
    %69 = vmatprep.subr.bf16.mxu0 0
    %70 = vmatpush1.bf16.msra.mxu0 0
    %71 = vmatprep.subr.bf16.mxu0 0
    %72 = vmatpush1.bf16.msra.mxu0 0
    %73 = vmatprep.subr.bf16.mxu0 0
    %74 = vmatpush1.bf16.msra.mxu0 0
    %75 = vmatprep.subr.bf16.mxu0 0
    %76 = vmatpush1.bf16.msra.mxu0 0
    %77 = vmatprep.subr.bf16.mxu0 0
    %78 = vmatpush1.bf16.msra.mxu0 0
    %79 = vmatprep.subr.bf16.mxu0 0
    %80 = vmatpush1.bf16.msra.mxu0 0
    %81 = vmatprep.subr.bf16.mxu0 0
    %82 = vmatpush1.bf16.msra.mxu0 0
    %83 = vmatprep.subr.bf16.mxu0 0
    %84 = vmatpush1.bf16.msra.mxu0 0
    %85 = vmatprep.mubr.bf16.mxu0 0
    %86 = vmatmul.mubr.bf16.gmra.mrb[0].mxu0 %v47
    %v87 = vpop.f32.mrb[0].mxu0
    %v88 = vadd.f32 %v43, %v87
    %v89 = vpop.f32.mrb[0].mxu0
    %v90 = vpop.f32.mrb[0].mxu0
    %v91 = vadd.f32 %v43, %v90
    %v92 = vpop.f32.mrb[0].mxu0
    %93 = vdwg.mxu0
    %v94 = vand.u32 2147483647, %v88
    %vm95 = vcmp.le.f32.partialorder %v94, 0.7853982
    %vm96 = vcmp.lt.s32.totalorder %v88, 0
    %v97 = vand.u32 %v88, 2139095040
    %v98 = vshrl.u32 %v97, 23
    %v99 = vsub.s32 %v98, 127
    %v100 = vand.u32 2147483647, %v88
    %v101 = vand.u32 %v100, 8388607
    %v102 = vor.u32 %v101, 8388608
    %v103 = vsub.s32 0, %v102
    %v104 = vadd.s32 %v99, 1
    %vm105 = vcmp.gt.s32.totalorder %v104, 0
    %v106 = vsel %vm105, %v104, 0
    %v107 = vshrl.u32 %v106, 5
    %v108 = vand.u32 %v106, 31
    %v109 = vsub.s32 32, %v108
    %v110 = vshrl.u32 683565275, %v109
    %v111 = vshll.u32 683565275, %v108
    %v112 = vshrl.u32 2475754826, %v109
    %v113 = vor.u32 %v111, %v112
    %v114 = vshll.u32 2475754826, %v108
    %v115 = vshrl.u32 2131351028, %v109
    %v116 = vor.u32 %v114, %v115
    %v117 = vshll.u32 2131351028, %v108
    %v118 = vshrl.u32 2102212464, %v109
    %v119 = vor.u32 %v117, %v118
    %v120 = vshll.u32 2102212464, %v108
    %v121 = vshrl.u32 920167782, %v109
    %v122 = vor.u32 %v120, %v121
    %v123 = vshll.u32 920167782, %v108
    %v124 = vshrl.u32 1326507024, %v109
    %v125 = vor.u32 %v123, %v124
    %vm126 = vcmp.lt.s32.totalorder %v107, 1
    %vm127 = vcmp.lt.s32.totalorder %v107, 2
    %vm128 = vcmp.lt.s32.totalorder %v107, 3
    %vm129 = vcmp.lt.s32.totalorder %v107, 4
    %v130 = vsel %vm126, %v110, %v113
    %v131 = vsel %vm129, %v119, 2102212464
    %v132 = vsel %vm128, %v116, %v131
    %v133 = vsel %vm127, %v130, %v132
    %v134 = vsel %vm126, %v113, %v116
    %v135 = vsel %vm129, %v122, 920167782
    %v136 = vsel %vm128, %v119, %v135
    %v137 = vsel %vm127, %v134, %v136
    %v138 = vsel %vm126, %v116, %v119
    %v139 = vsel %vm129, %v125, 1326507024
    %v140 = vsel %vm128, %v122, %v139
    %v141 = vsel %vm127, %v138, %v140
    %v142 = vshll.u32 %v102, 8
    %v143 = vmul.u32.u64.compose %v142, %v141
    %v144 = vextract.low.u32 %v143
    %v145 = vextract.high.u32 %v143
    %v146 = vmul.u32.u64.compose %v142, %v137
    %v147 = vextract.low.u32 %v146
    %v148 = vextract.high.u32 %v146
    %v149 = vmul.u32 %v142, %v133
    %v150 = vadd.s32 %v145, %v147
    %vm151 = vc.u32 %v145, %v147
    %v152 = vadd.s32 %v148, 1
    %v153 = vsel %vm151, %v152, %v148
    %v154 = vadd.s32 %v149, %v153
    %v155 = vadd.s32 %v154, 536870912
    %v156 = vshrl.u32 %v155, 30
    %v157 = vshll.u32 %v156, 30
    %v158 = vsub.s32 %v154, %v157
    %vm159 = vcmp.lt.s32.totalorder %v158, 0
    %v160 = vsub.s32 0, %v158
    %v161 = vsel %vm159, %v160, %v158
    %v162 = vclz %v161
    %v163 = vsub.s32 %v162, 2
    %vm164 = vcmp.gt.s32.totalorder 0, %v163
    %v165 = vsel %vm164, 0, %v163
    %v166 = vsub.s32 32, %v165
    %v167 = vshll.u32 %v158, %v165
    %v168 = vshrl.u32 %v150, %v166
    %v169 = vor.u32 %v167, %v168
    %v170 = vsub.s32 4294967266, %v165
    %v171 = vadd.s32 %v170, 127
    %v172 = vshll.u32 %v171, 23
    %v173 = vor.u32 4788187, %v172
    %v174 = vand.u32 2147483647, %v173
    %v176 = vcvt.s32.f32 %v169
    %v177 = vmul.f32 %v176, %v174
    %v178 = vxor.u32 %v177, 2147483648
    %v179 = vsel %vm96, %v178, %v177
    %v180 = vsub.s32 4, %v156
    %v181 = vsel %vm96, %v180, %v156
    %v182 = vsel %vm95, %v88, %v179
    %v183 = vsel %vm95, 0, %v181
    %v184 = vcosq.f32.pop %v182
    %v185 = vsinq.f32.pop %v182
    %vm186 = vweird.f32 %v88
    %v187 = vadd.s32 %v183, 3
    %v188 = vand.u32 %v187, 3
    %vm189 = vcmp.lt.s32.totalorder %v188, 2
    %vm190 = vcmp.eq.s32.totalorder %v188, 0
    %v191 = vxor.u32 %v185, 2147483648
    %v192 = vsel %vm190, %v184, %v191
    %vm193 = vcmp.eq.s32.totalorder %v188, 2
    %v194 = vxor.u32 %v184, 2147483648
    %v195 = vsel %vm193, %v194, %v185
    %v196 = vsel %vm189, %v192, %v195
    %v197 = vsel %vm186, nan, %v196
    %v198 = vand.u32 2147483647, %v91
    %vm199 = vcmp.le.f32.partialorder %v198, 0.7853982
    %vm200 = vcmp.lt.s32.totalorder %v91, 0
    %v201 = vand.u32 %v91, 2139095040
    %v202 = vshrl.u32 %v201, 23
    %v203 = vsub.s32 %v202, 127
    %v204 = vand.u32 2147483647, %v91
    %v205 = vand.u32 %v204, 8388607
    %v206 = vor.u32 %v205, 8388608
    %v207 = vsub.s32 0, %v206
    %v208 = vadd.s32 %v203, 1
    %vm209 = vcmp.gt.s32.totalorder %v208, 0
    %v210 = vsel %vm209, %v208, 0
    %v211 = vshrl.u32 %v210, 5
    %v212 = vand.u32 %v210, 31
    %v213 = vsub.s32 32, %v212
    %v214 = vshrl.u32 683565275, %v213
    %v215 = vshll.u32 683565275, %v212
    %v216 = vshrl.u32 2475754826, %v213
    %v217 = vor.u32 %v215, %v216
    %v218 = vshll.u32 2475754826, %v212
    %v219 = vshrl.u32 2131351028, %v213
    %v220 = vor.u32 %v218, %v219
    %v221 = vshll.u32 2131351028, %v212
    %v222 = vshrl.u32 2102212464, %v213
    %v223 = vor.u32 %v221, %v222
    %v224 = vshll.u32 2102212464, %v212
    %v225 = vshrl.u32 920167782, %v213
    %v226 = vor.u32 %v224, %v225
    %v227 = vshll.u32 920167782, %v212
    %v228 = vshrl.u32 1326507024, %v213
    %v229 = vor.u32 %v227, %v228
    %vm230 = vcmp.lt.s32.totalorder %v211, 1
    %vm231 = vcmp.lt.s32.totalorder %v211, 2
    %vm232 = vcmp.lt.s32.totalorder %v211, 3
    %vm233 = vcmp.lt.s32.totalorder %v211, 4
    %v234 = vsel %vm230, %v214, %v217
    %v235 = vsel %vm233, %v223, 2102212464
    %v236 = vsel %vm232, %v220, %v235
    %v237 = vsel %vm231, %v234, %v236
    %v238 = vsel %vm230, %v217, %v220
    %v239 = vsel %vm233, %v226, 920167782
    %v240 = vsel %vm232, %v223, %v239
    %v241 = vsel %vm231, %v238, %v240
    %v242 = vsel %vm230, %v220, %v223
    %v243 = vsel %vm233, %v229, 1326507024
    %v244 = vsel %vm232, %v226, %v243
    %v245 = vsel %vm231, %v242, %v244
    %v246 = vshll.u32 %v206, 8
    %v247 = vmul.u32.u64.compose %v246, %v245
    %v248 = vextract.low.u32 %v247
    %v249 = vextract.high.u32 %v247
    %v250 = vmul.u32.u64.compose %v246, %v241
    %v251 = vextract.low.u32 %v250
    %v252 = vextract.high.u32 %v250
    %v253 = vmul.u32 %v246, %v237
    %v254 = vadd.s32 %v249, %v251
    %vm255 = vc.u32 %v249, %v251
    %v256 = vadd.s32 %v252, 1
    %v257 = vsel %vm255, %v256, %v252
    %v258 = vadd.s32 %v253, %v257
    %v259 = vadd.s32 %v258, 536870912
    %v260 = vshrl.u32 %v259, 30
    %v261 = vshll.u32 %v260, 30
    %v262 = vsub.s32 %v258, %v261
    %vm263 = vcmp.lt.s32.totalorder %v262, 0
    %v264 = vsub.s32 0, %v262
    %v265 = vsel %vm263, %v264, %v262
    %v266 = vclz %v265
    %v267 = vsub.s32 %v266, 2
    %vm268 = vcmp.gt.s32.totalorder 0, %v267
    %v269 = vsel %vm268, 0, %v267
    %v270 = vsub.s32 32, %v269
    %v271 = vshll.u32 %v262, %v269
    %v272 = vshrl.u32 %v254, %v270
    %v273 = vor.u32 %v271, %v272
    %v274 = vsub.s32 4294967266, %v269
    %v275 = vadd.s32 %v274, 127
    %v276 = vshll.u32 %v275, 23
    %v277 = vor.u32 4788187, %v276
    %v278 = vand.u32 2147483647, %v277
    %v280 = vcvt.s32.f32 %v273
    %v281 = vmul.f32 %v280, %v278
    %v282 = vxor.u32 %v281, 2147483648
    %v283 = vsel %vm200, %v282, %v281
    %v284 = vsub.s32 4, %v260
    %v285 = vsel %vm200, %v284, %v260
    %v286 = vsel %vm199, %v91, %v283
    %v287 = vsel %vm199, 0, %v285
    %v288 = vcosq.f32.pop %v286
    %v289 = vsinq.f32.pop %v286
    %vm290 = vweird.f32 %v91
    %v291 = vadd.s32 %v287, 3
    %v292 = vand.u32 %v291, 3
    %vm293 = vcmp.lt.s32.totalorder %v292, 2
    %vm294 = vcmp.eq.s32.totalorder %v292, 0
    %v295 = vxor.u32 %v289, 2147483648
    %v296 = vsel %vm294, %v288, %v295
    %vm297 = vcmp.eq.s32.totalorder %v292, 2
    %v298 = vxor.u32 %v288, 2147483648
    %v299 = vsel %vm297, %v298, %v289
    %v300 = vsel %vm293, %v296, %v299
    %v301 = vsel %vm290, nan, %v300
    %v304 = vrot.slane %v197, 7
    %v305 = vrot.slane %v301, 7
    %vm308 = vcmask 1040384
    %v309 = vsel %vm308, %v304, %v304
    %v310 = vsel %vm308, %v305, %v305
    %313 = vrot.lane.b32.xlu0 %v309, 32
    %v314 = vpop.permute.xlu0 %313
    %315 = vrot.lane.b32.xlu0 %v310, 32
    %v316 = vpop.permute.xlu0 %315
    %vm319 = vcmask 261120
    %v320 = vsel %vm319, %v197, %v314
    %v321 = vsel %vm319, %v301, %v316
    %vm322 = vcmask 523264
    %v323 = vsel %vm322, %v320, 0.0
    %324 = vadd.xlane.f32.xlu0 %v323
    %v325 = vpop.xlane.xlu0 %324
    %v326 = vsel %vm322, %v321, 0.0
    %327 = vadd.xlane.f32.xlu0 %v326
    %v328 = vpop.xlane.xlu0 %327
    %v329 = vmul.f32 %v325, 0.015625
    %v330 = vmul.f32 %v328, 0.015625
    %v331 = vmul.f32 %v320, %v320
    %v332 = vmul.f32 %v321, %v321
    %v333 = vsel %vm322, %v331, 0.0
    %334 = vadd.xlane.f32.xlu0 %v333
    %v335 = vpop.xlane.xlu0 %334
    %v336 = vsel %vm322, %v332, 0.0
    %337 = vadd.xlane.f32.xlu0 %v336
    %v338 = vpop.xlane.xlu0 %337
    %v339 = vmul.f32 %v335, 0.015625
    %v340 = vmul.f32 %v338, 0.015625
    %v341 = vmul.f32 %v329, %v329
    %v342 = vmul.f32 %v330, %v330
    %v343 = vsub.f32 %v339, %v341
    %v344 = vsub.f32 %v340, %v342
    %v345 = vsub.f32 %v320, %v329
    %v346 = vsub.f32 %v321, %v330
    %v347 = vadd.f32 %v343, 1e-05
    %v348 = vadd.f32 %v344, 1e-05
    %v349 = vrsqrt.pop %v347
    %v350 = vrsqrt.pop %v348
    %v351 = vmul.f32 %v345, %v349
    %v352 = vmul.f32 %v346, %v350
    %v353 = vld [vmem:[%s3] sm:$0xf]
    %v354 = vld [vmem:[%s3 + $0x4] sm:$0xf]
    %v355 = vld [vmem:[%s3 + $0x8] sm:$0xf]
    %v356 = vld [vmem:[%s3 + $0xc] sm:$0xf]
    %v357 = vld [vmem:[%s3 + $0x10] sm:$0xf]
    %v358 = vld [vmem:[%s3 + $0x14] sm:$0xf]
    %v359 = vld [vmem:[%s3 + $0x18] sm:$0xf]
    %v360 = vld [vmem:[%s3 + $0x1c] sm:$0xf]
    %v361 = vld [vmem:[%s4] sm:$0x1]
    %v362 = vpack.c.bf16 %v352, %v351
    %v364 = vlaneseq
    %v365 = vshrl.u32 %v364, 7
    %v366 = vsub.s32 0, %v365
    %v367 = vrot.slane %v361, %v366
    %v377 = vunpack.c.l.b16 %v353
    %v378 = vunpack.c.l.b16 %v354
    %v379 = vunpack.c.l.b16 %v355
    %v380 = vunpack.c.l.b16 %v356
    %v381 = vunpack.c.l.b16 %v357
    %v382 = vunpack.c.l.b16 %v358
    %v383 = vunpack.c.l.b16 %v359
    %v384 = vunpack.c.l.b16 %v360
    %v385 = vpack.c.b16 %v378, %v377
    %v386 = vpack.c.b16 %v380, %v379
    %v387 = vpack.c.b16 %v382, %v381
    %v388 = vpack.c.b16 %v384, %v383
    %v394 = vsel %vm322, %v362, 0
    %396 = vmatprep.subr.bf16.mxu0 0
    %397 = vmatpush1.bf16.msra.mxu0 %v385
    %398 = vmatprep.subr.bf16.mxu0 0
    %399 = vmatpush1.bf16.msra.mxu0 %v386
    %400 = vmatprep.subr.bf16.mxu0 0
    %401 = vmatpush1.bf16.msra.mxu0 %v387
    %402 = vmatprep.subr.bf16.mxu0 0
    %403 = vmatpush1.bf16.msra.mxu0 %v388
    %404 = vmatprep.subr.bf16.mxu0 0
    %405 = vmatpush1.bf16.msra.mxu0 0
    %406 = vmatprep.subr.bf16.mxu0 0
    %407 = vmatpush1.bf16.msra.mxu0 0
    %408 = vmatprep.subr.bf16.mxu0 0
    %409 = vmatpush1.bf16.msra.mxu0 0
    %410 = vmatprep.subr.bf16.mxu0 0
    %411 = vmatpush1.bf16.msra.mxu0 0
    %412 = vmatprep.subr.bf16.mxu0 0
    %413 = vmatpush1.bf16.msra.mxu0 0
    %414 = vmatprep.subr.bf16.mxu0 0
    %415 = vmatpush1.bf16.msra.mxu0 0
    %416 = vmatprep.subr.bf16.mxu0 0
    %417 = vmatpush1.bf16.msra.mxu0 0
    %418 = vmatprep.subr.bf16.mxu0 0
    %419 = vmatpush1.bf16.msra.mxu0 0
    %420 = vmatprep.subr.bf16.mxu0 0
    %421 = vmatpush1.bf16.msra.mxu0 0
    %422 = vmatprep.subr.bf16.mxu0 0
    %423 = vmatpush1.bf16.msra.mxu0 0
    %424 = vmatprep.subr.bf16.mxu0 0
    %425 = vmatpush1.bf16.msra.mxu0 0
    %426 = vmatprep.subr.bf16.mxu0 0
    %427 = vmatpush1.bf16.msra.mxu0 0
    %428 = vmatprep.mubr.bf16.mxu0 0
    %429 = vmatmul.mubr.bf16.gmra.mrb[0].mxu0 %v394
    %v430 = vpop.f32.mrb[0].mxu0
    %v431 = vadd.f32 %v367, %v430
    %v432 = vpop.f32.mrb[0].mxu0
    %v433 = vpop.f32.mrb[0].mxu0
    %v434 = vadd.f32 %v367, %v433
    %v435 = vpop.f32.mrb[0].mxu0
    %436 = vdwg.mxu0
    %v437 = vand.u32 2147483647, %v431
    %vm438 = vcmp.le.f32.partialorder %v437, 0.7853982
    %vm439 = vcmp.lt.s32.totalorder %v431, 0
    %v440 = vand.u32 %v431, 2139095040
    %v441 = vshrl.u32 %v440, 23
    %v442 = vsub.s32 %v441, 127
    %v443 = vand.u32 2147483647, %v431
    %v444 = vand.u32 %v443, 8388607
    %v445 = vor.u32 %v444, 8388608
    %v446 = vsub.s32 0, %v445
    %v447 = vadd.s32 %v442, 1
    %vm448 = vcmp.gt.s32.totalorder %v447, 0
    %v449 = vsel %vm448, %v447, 0
    %v450 = vshrl.u32 %v449, 5
    %v451 = vand.u32 %v449, 31
    %v452 = vsub.s32 32, %v451
    %v453 = vshrl.u32 683565275, %v452
    %v454 = vshll.u32 683565275, %v451
    %v455 = vshrl.u32 2475754826, %v452
    %v456 = vor.u32 %v454, %v455
    %v457 = vshll.u32 2475754826, %v451
    %v458 = vshrl.u32 2131351028, %v452
    %v459 = vor.u32 %v457, %v458
    %v460 = vshll.u32 2131351028, %v451
    %v461 = vshrl.u32 2102212464, %v452
    %v462 = vor.u32 %v460, %v461
    %v463 = vshll.u32 2102212464, %v451
    %v464 = vshrl.u32 920167782, %v452
    %v465 = vor.u32 %v463, %v464
    %v466 = vshll.u32 920167782, %v451
    %v467 = vshrl.u32 1326507024, %v452
    %v468 = vor.u32 %v466, %v467
    %vm469 = vcmp.lt.s32.totalorder %v450, 1
    %vm470 = vcmp.lt.s32.totalorder %v450, 2
    %vm471 = vcmp.lt.s32.totalorder %v450, 3
    %vm472 = vcmp.lt.s32.totalorder %v450, 4
    %v473 = vsel %vm469, %v453, %v456
    %v474 = vsel %vm472, %v462, 2102212464
    %v475 = vsel %vm471, %v459, %v474
    %v476 = vsel %vm470, %v473, %v475
    %v477 = vsel %vm469, %v456, %v459
    %v478 = vsel %vm472, %v465, 920167782
    %v479 = vsel %vm471, %v462, %v478
    %v480 = vsel %vm470, %v477, %v479
    %v481 = vsel %vm469, %v459, %v462
    %v482 = vsel %vm472, %v468, 1326507024
    %v483 = vsel %vm471, %v465, %v482
    %v484 = vsel %vm470, %v481, %v483
    %v485 = vshll.u32 %v445, 8
    %v486 = vmul.u32.u64.compose %v485, %v484
    %v487 = vextract.low.u32 %v486
    %v488 = vextract.high.u32 %v486
    %v489 = vmul.u32.u64.compose %v485, %v480
    %v490 = vextract.low.u32 %v489
    %v491 = vextract.high.u32 %v489
    %v492 = vmul.u32 %v485, %v476
    %v493 = vadd.s32 %v488, %v490
    %vm494 = vc.u32 %v488, %v490
    %v495 = vadd.s32 %v491, 1
    %v496 = vsel %vm494, %v495, %v491
    %v497 = vadd.s32 %v492, %v496
    %v498 = vadd.s32 %v497, 536870912
    %v499 = vshrl.u32 %v498, 30
    %v500 = vshll.u32 %v499, 30
    %v501 = vsub.s32 %v497, %v500
    %vm502 = vcmp.lt.s32.totalorder %v501, 0
    %v503 = vsub.s32 0, %v501
    %v504 = vsel %vm502, %v503, %v501
    %v505 = vclz %v504
    %v506 = vsub.s32 %v505, 2
    %vm507 = vcmp.gt.s32.totalorder 0, %v506
    %v508 = vsel %vm507, 0, %v506
    %v509 = vsub.s32 32, %v508
    %v510 = vshll.u32 %v501, %v508
    %v511 = vshrl.u32 %v493, %v509
    %v512 = vor.u32 %v510, %v511
    %v513 = vsub.s32 4294967266, %v508
    %v514 = vadd.s32 %v513, 127
    %v515 = vshll.u32 %v514, 23
    %v516 = vor.u32 4788187, %v515
    %v517 = vand.u32 2147483647, %v516
    %v519 = vcvt.s32.f32 %v512
    %v520 = vmul.f32 %v519, %v517
    %v521 = vxor.u32 %v520, 2147483648
    %v522 = vsel %vm439, %v521, %v520
    %v523 = vsub.s32 4, %v499
    %v524 = vsel %vm439, %v523, %v499
    %v525 = vsel %vm438, %v431, %v522
    %v526 = vsel %vm438, 0, %v524
    %v527 = vcosq.f32.pop %v525
    %v528 = vsinq.f32.pop %v525
    %vm529 = vweird.f32 %v431
    %v530 = vadd.s32 %v526, 3
    %v531 = vand.u32 %v530, 3
    %vm532 = vcmp.lt.s32.totalorder %v531, 2
    %vm533 = vcmp.eq.s32.totalorder %v531, 0
    %v534 = vxor.u32 %v528, 2147483648
    %v535 = vsel %vm533, %v527, %v534
    %vm536 = vcmp.eq.s32.totalorder %v531, 2
    %v537 = vxor.u32 %v527, 2147483648
    %v538 = vsel %vm536, %v537, %v528
    %v539 = vsel %vm532, %v535, %v538
    %v540 = vsel %vm529, nan, %v539
    %v541 = vand.u32 2147483647, %v434
    %vm542 = vcmp.le.f32.partialorder %v541, 0.7853982
    %vm543 = vcmp.lt.s32.totalorder %v434, 0
    %v544 = vand.u32 %v434, 2139095040
    %v545 = vshrl.u32 %v544, 23
    %v546 = vsub.s32 %v545, 127
    %v547 = vand.u32 2147483647, %v434
    %v548 = vand.u32 %v547, 8388607
    %v549 = vor.u32 %v548, 8388608
    %v550 = vsub.s32 0, %v549
    %v551 = vadd.s32 %v546, 1
    %vm552 = vcmp.gt.s32.totalorder %v551, 0
    %v553 = vsel %vm552, %v551, 0
    %v554 = vshrl.u32 %v553, 5
    %v555 = vand.u32 %v553, 31
    %v556 = vsub.s32 32, %v555
    %v557 = vshrl.u32 683565275, %v556
    %v558 = vshll.u32 683565275, %v555
    %v559 = vshrl.u32 2475754826, %v556
    %v560 = vor.u32 %v558, %v559
    %v561 = vshll.u32 2475754826, %v555
    %v562 = vshrl.u32 2131351028, %v556
    %v563 = vor.u32 %v561, %v562
    %v564 = vshll.u32 2131351028, %v555
    %v565 = vshrl.u32 2102212464, %v556
    %v566 = vor.u32 %v564, %v565
    %v567 = vshll.u32 2102212464, %v555
    %v568 = vshrl.u32 920167782, %v556
    %v569 = vor.u32 %v567, %v568
    %v570 = vshll.u32 920167782, %v555
    %v571 = vshrl.u32 1326507024, %v556
    %v572 = vor.u32 %v570, %v571
    %vm573 = vcmp.lt.s32.totalorder %v554, 1
    %vm574 = vcmp.lt.s32.totalorder %v554, 2
    %vm575 = vcmp.lt.s32.totalorder %v554, 3
    %vm576 = vcmp.lt.s32.totalorder %v554, 4
    %v577 = vsel %vm573, %v557, %v560
    %v578 = vsel %vm576, %v566, 2102212464
    %v579 = vsel %vm575, %v563, %v578
    %v580 = vsel %vm574, %v577, %v579
    %v581 = vsel %vm573, %v560, %v563
    %v582 = vsel %vm576, %v569, 920167782
    %v583 = vsel %vm575, %v566, %v582
    %v584 = vsel %vm574, %v581, %v583
    %v585 = vsel %vm573, %v563, %v566
    %v586 = vsel %vm576, %v572, 1326507024
    %v587 = vsel %vm575, %v569, %v586
    %v588 = vsel %vm574, %v585, %v587
    %v589 = vshll.u32 %v549, 8
    %v590 = vmul.u32.u64.compose %v589, %v588
    %v591 = vextract.low.u32 %v590
    %v592 = vextract.high.u32 %v590
    %v593 = vmul.u32.u64.compose %v589, %v584
    %v594 = vextract.low.u32 %v593
    %v595 = vextract.high.u32 %v593
    %v596 = vmul.u32 %v589, %v580
    %v597 = vadd.s32 %v592, %v594
    %vm598 = vc.u32 %v592, %v594
    %v599 = vadd.s32 %v595, 1
    %v600 = vsel %vm598, %v599, %v595
    %v601 = vadd.s32 %v596, %v600
    %v602 = vadd.s32 %v601, 536870912
    %v603 = vshrl.u32 %v602, 30
    %v604 = vshll.u32 %v603, 30
    %v605 = vsub.s32 %v601, %v604
    %vm606 = vcmp.lt.s32.totalorder %v605, 0
    %v607 = vsub.s32 0, %v605
    %v608 = vsel %vm606, %v607, %v605
    %v609 = vclz %v608
    %v610 = vsub.s32 %v609, 2
    %vm611 = vcmp.gt.s32.totalorder 0, %v610
    %v612 = vsel %vm611, 0, %v610
    %v613 = vsub.s32 32, %v612
    %v614 = vshll.u32 %v605, %v612
    %v615 = vshrl.u32 %v597, %v613
    %v616 = vor.u32 %v614, %v615
    %v617 = vsub.s32 4294967266, %v612
    %v618 = vadd.s32 %v617, 127
    %v619 = vshll.u32 %v618, 23
    %v620 = vor.u32 4788187, %v619
    %v621 = vand.u32 2147483647, %v620
    %v623 = vcvt.s32.f32 %v616
    %v624 = vmul.f32 %v623, %v621
    %v625 = vxor.u32 %v624, 2147483648
    %v626 = vsel %vm543, %v625, %v624
    %v627 = vsub.s32 4, %v603
    %v628 = vsel %vm543, %v627, %v603
    %v629 = vsel %vm542, %v434, %v626
    %v630 = vsel %vm542, 0, %v628
    %v631 = vcosq.f32.pop %v629
    %v632 = vsinq.f32.pop %v629
    %vm633 = vweird.f32 %v434
    %v634 = vadd.s32 %v630, 3
    %v635 = vand.u32 %v634, 3
    %vm636 = vcmp.lt.s32.totalorder %v635, 2
    %vm637 = vcmp.eq.s32.totalorder %v635, 0
    %v638 = vxor.u32 %v632, 2147483648
    %v639 = vsel %vm637, %v631, %v638
    %vm640 = vcmp.eq.s32.totalorder %v635, 2
    %v641 = vxor.u32 %v631, 2147483648
    %v642 = vsel %vm640, %v641, %v632
    %v643 = vsel %vm636, %v639, %v642
    %v644 = vsel %vm633, nan, %v643
    %vm645 = vcmask 392192
    %v646 = vsel %vm645, %v540, 0.0
    %647 = vadd.xlane.f32.xlu0 %v646
    %v648 = vpop.xlane.xlu0 %647
    %v649 = vsel %vm645, %v644, 0.0
    %650 = vadd.xlane.f32.xlu0 %v649
    %v651 = vpop.xlane.xlu0 %650
    %v652 = vmul.f32 %v648, 0.020833334
    %v653 = vmul.f32 %v651, 0.020833334
    %v654 = vmul.f32 %v540, %v540
    %v655 = vmul.f32 %v644, %v644
    %v656 = vsel %vm645, %v654, 0.0
    %657 = vadd.xlane.f32.xlu0 %v656
    %v658 = vpop.xlane.xlu0 %657
    %v659 = vsel %vm645, %v655, 0.0
    %660 = vadd.xlane.f32.xlu0 %v659
    %v661 = vpop.xlane.xlu0 %660
    %v662 = vmul.f32 %v658, 0.020833334
    %v663 = vmul.f32 %v661, 0.020833334
    %v664 = vmul.f32 %v652, %v652
    %v665 = vmul.f32 %v653, %v653
    %v666 = vsub.f32 %v662, %v664
    %v667 = vsub.f32 %v663, %v665
    %v668 = vsub.f32 %v540, %v652
    %v669 = vsub.f32 %v644, %v653
    %v670 = vadd.f32 %v666, 1e-05
    %v671 = vadd.f32 %v667, 1e-05
    %v672 = vrsqrt.pop %v670
    %v673 = vrsqrt.pop %v671
    %v674 = vmul.f32 %v668, %v672
    %v675 = vmul.f32 %v669, %v673
    %v676 = vld [vmem:[%s5] sm:$0xf]
    %v677 = vld [vmem:[%s5 + $0x4] sm:$0xf]
    %v678 = vld [vmem:[%s5 + $0x8] sm:$0xf]
    %v679 = vld [vmem:[%s5 + $0xc] sm:$0xf]
    %v680 = vld [vmem:[%s5 + $0x10] sm:$0xf]
    %v681 = vld [vmem:[%s5 + $0x14] sm:$0xf]
    %v682 = vld [vmem:[%s6] sm:$0x1]
    %v683 = vpack.c.bf16 %v675, %v674
    %v685 = vlaneseq
    %v686 = vshrl.u32 %v685, 7
    %v687 = vsub.s32 0, %v686
    %v688 = vrot.slane %v682, %v687
    %v696 = vunpack.c.l.b16 %v676
    %v697 = vunpack.c.l.b16 %v677
    %v698 = vunpack.c.l.b16 %v678
    %v699 = vunpack.c.l.b16 %v679
    %v700 = vunpack.c.l.b16 %v680
    %v701 = vunpack.c.l.b16 %v681
    %v702 = vpack.c.b16 %v697, %v696
    %v703 = vpack.c.b16 %v699, %v698
    %v704 = vpack.c.b16 %v701, %v700
    %v709 = vsel %vm645, %v683, 0
    %711 = vmatprep.subr.bf16.mxu0 0
    %712 = vmatpush1.bf16.msra.mxu0 %v702
    %713 = vmatprep.subr.bf16.mxu0 0
    %714 = vmatpush1.bf16.msra.mxu0 %v703
    %715 = vmatprep.subr.bf16.mxu0 0
    %716 = vmatpush1.bf16.msra.mxu0 %v704
    %717 = vmatprep.subr.bf16.mxu0 0
    %718 = vmatpush1.bf16.msra.mxu0 0
    %719 = vmatprep.subr.bf16.mxu0 0
    %720 = vmatpush1.bf16.msra.mxu0 0
    %721 = vmatprep.subr.bf16.mxu0 0
    %722 = vmatpush1.bf16.msra.mxu0 0
    %723 = vmatprep.subr.bf16.mxu0 0
    %724 = vmatpush1.bf16.msra.mxu0 0
    %725 = vmatprep.subr.bf16.mxu0 0
    %726 = vmatpush1.bf16.msra.mxu0 0
    %727 = vmatprep.subr.bf16.mxu0 0
    %728 = vmatpush1.bf16.msra.mxu0 0
    %729 = vmatprep.subr.bf16.mxu0 0
    %730 = vmatpush1.bf16.msra.mxu0 0
    %731 = vmatprep.subr.bf16.mxu0 0
    %732 = vmatpush1.bf16.msra.mxu0 0
    %733 = vmatprep.subr.bf16.mxu0 0
    %734 = vmatpush1.bf16.msra.mxu0 0
    %735 = vmatprep.subr.bf16.mxu0 0
    %736 = vmatpush1.bf16.msra.mxu0 0
    %737 = vmatprep.subr.bf16.mxu0 0
    %738 = vmatpush1.bf16.msra.mxu0 0
    %739 = vmatprep.subr.bf16.mxu0 0
    %740 = vmatpush1.bf16.msra.mxu0 0
    %741 = vmatprep.subr.bf16.mxu0 0
    %742 = vmatpush1.bf16.msra.mxu0 0
    %743 = vmatprep.mubr.bf16.mxu0 0
    %744 = vmatmul.mubr.bf16.gmra.mrb[0].mxu0 %v709
    %v745 = vpop.f32.mrb[0].mxu0
    %v746 = vadd.f32 %v688, %v745
    %v747 = vpop.f32.mrb[0].mxu0
    %v748 = vpop.f32.mrb[0].mxu0
    %v749 = vadd.f32 %v688, %v748
    %v750 = vpop.f32.mrb[0].mxu0
    %751 = vdwg.mxu0
    %v752 = vand.u32 2147483647, %v746
    %vm753 = vcmp.le.f32.partialorder %v752, 0.7853982
    %vm754 = vcmp.lt.s32.totalorder %v746, 0
    %v755 = vand.u32 %v746, 2139095040
    %v756 = vshrl.u32 %v755, 23
    %v757 = vsub.s32 %v756, 127
    %v758 = vand.u32 2147483647, %v746
    %v759 = vand.u32 %v758, 8388607
    %v760 = vor.u32 %v759, 8388608
    %v761 = vsub.s32 0, %v760
    %v762 = vadd.s32 %v757, 1
    %vm763 = vcmp.gt.s32.totalorder %v762, 0
    %v764 = vsel %vm763, %v762, 0
    %v765 = vshrl.u32 %v764, 5
    %v766 = vand.u32 %v764, 31
    %v767 = vsub.s32 32, %v766
    %v768 = vshrl.u32 683565275, %v767
    %v769 = vshll.u32 683565275, %v766
    %v770 = vshrl.u32 2475754826, %v767
    %v771 = vor.u32 %v769, %v770
    %v772 = vshll.u32 2475754826, %v766
    %v773 = vshrl.u32 2131351028, %v767
    %v774 = vor.u32 %v772, %v773
    %v775 = vshll.u32 2131351028, %v766
    %v776 = vshrl.u32 2102212464, %v767
    %v777 = vor.u32 %v775, %v776
    %v778 = vshll.u32 2102212464, %v766
    %v779 = vshrl.u32 920167782, %v767
    %v780 = vor.u32 %v778, %v779
    %v781 = vshll.u32 920167782, %v766
    %v782 = vshrl.u32 1326507024, %v767
    %v783 = vor.u32 %v781, %v782
    %vm784 = vcmp.lt.s32.totalorder %v765, 1
    %vm785 = vcmp.lt.s32.totalorder %v765, 2
    %vm786 = vcmp.lt.s32.totalorder %v765, 3
    %vm787 = vcmp.lt.s32.totalorder %v765, 4
    %v788 = vsel %vm784, %v768, %v771
    %v789 = vsel %vm787, %v777, 2102212464
    %v790 = vsel %vm786, %v774, %v789
    %v791 = vsel %vm785, %v788, %v790
    %v792 = vsel %vm784, %v771, %v774
    %v793 = vsel %vm787, %v780, 920167782
    %v794 = vsel %vm786, %v777, %v793
    %v795 = vsel %vm785, %v792, %v794
    %v796 = vsel %vm784, %v774, %v777
    %v797 = vsel %vm787, %v783, 1326507024
    %v798 = vsel %vm786, %v780, %v797
    %v799 = vsel %vm785, %v796, %v798
    %v800 = vshll.u32 %v760, 8
    %v801 = vmul.u32.u64.compose %v800, %v799
    %v802 = vextract.low.u32 %v801
    %v803 = vextract.high.u32 %v801
    %v804 = vmul.u32.u64.compose %v800, %v795
    %v805 = vextract.low.u32 %v804
    %v806 = vextract.high.u32 %v804
    %v807 = vmul.u32 %v800, %v791
    %v808 = vadd.s32 %v803, %v805
    %vm809 = vc.u32 %v803, %v805
    %v810 = vadd.s32 %v806, 1
    %v811 = vsel %vm809, %v810, %v806
    %v812 = vadd.s32 %v807, %v811
    %v813 = vadd.s32 %v812, 536870912
    %v814 = vshrl.u32 %v813, 30
    %v815 = vshll.u32 %v814, 30
    %v816 = vsub.s32 %v812, %v815
    %vm817 = vcmp.lt.s32.totalorder %v816, 0
    %v818 = vsub.s32 0, %v816
    %v819 = vsel %vm817, %v818, %v816
    %v820 = vclz %v819
    %v821 = vsub.s32 %v820, 2
    %vm822 = vcmp.gt.s32.totalorder 0, %v821
    %v823 = vsel %vm822, 0, %v821
    %v824 = vsub.s32 32, %v823
    %v825 = vshll.u32 %v816, %v823
    %v826 = vshrl.u32 %v808, %v824
    %v827 = vor.u32 %v825, %v826
    %v828 = vsub.s32 4294967266, %v823
    %v829 = vadd.s32 %v828, 127
    %v830 = vshll.u32 %v829, 23
    %v831 = vor.u32 4788187, %v830
    %v832 = vand.u32 2147483647, %v831
    %v834 = vcvt.s32.f32 %v827
    %v835 = vmul.f32 %v834, %v832
    %v836 = vxor.u32 %v835, 2147483648
    %v837 = vsel %vm754, %v836, %v835
    %v838 = vsub.s32 4, %v814
    %v839 = vsel %vm754, %v838, %v814
    %v840 = vsel %vm753, %v746, %v837
    %v841 = vsel %vm753, 0, %v839
    %v842 = vcosq.f32.pop %v840
    %v843 = vsinq.f32.pop %v840
    %vm844 = vweird.f32 %v746
    %v845 = vadd.s32 %v841, 3
    %v846 = vand.u32 %v845, 3
    %vm847 = vcmp.lt.s32.totalorder %v846, 2
    %vm848 = vcmp.eq.s32.totalorder %v846, 0
    %v849 = vxor.u32 %v843, 2147483648
    %v850 = vsel %vm848, %v842, %v849
    %vm851 = vcmp.eq.s32.totalorder %v846, 2
    %v852 = vxor.u32 %v842, 2147483648
    %v853 = vsel %vm851, %v852, %v843
    %v854 = vsel %vm847, %v850, %v853
    %v855 = vsel %vm844, nan, %v854
    %v856 = vand.u32 2147483647, %v749
    %vm857 = vcmp.le.f32.partialorder %v856, 0.7853982
    %vm858 = vcmp.lt.s32.totalorder %v749, 0
    %v859 = vand.u32 %v749, 2139095040
    %v860 = vshrl.u32 %v859, 23
    %v861 = vsub.s32 %v860, 127
    %v862 = vand.u32 2147483647, %v749
    %v863 = vand.u32 %v862, 8388607
    %v864 = vor.u32 %v863, 8388608
    %v865 = vsub.s32 0, %v864
    %v866 = vadd.s32 %v861, 1
    %vm867 = vcmp.gt.s32.totalorder %v866, 0
    %v868 = vsel %vm867, %v866, 0
    %v869 = vshrl.u32 %v868, 5
    %v870 = vand.u32 %v868, 31
    %v871 = vsub.s32 32, %v870
    %v872 = vshrl.u32 683565275, %v871
    %v873 = vshll.u32 683565275, %v870
    %v874 = vshrl.u32 2475754826, %v871
    %v875 = vor.u32 %v873, %v874
    %v876 = vshll.u32 2475754826, %v870
    %v877 = vshrl.u32 2131351028, %v871
    %v878 = vor.u32 %v876, %v877
    %v879 = vshll.u32 2131351028, %v870
    %v880 = vshrl.u32 2102212464, %v871
    %v881 = vor.u32 %v879, %v880
    %v882 = vshll.u32 2102212464, %v870
    %v883 = vshrl.u32 920167782, %v871
    %v884 = vor.u32 %v882, %v883
    %v885 = vshll.u32 920167782, %v870
    %v886 = vshrl.u32 1326507024, %v871
    %v887 = vor.u32 %v885, %v886
    %vm888 = vcmp.lt.s32.totalorder %v869, 1
    %vm889 = vcmp.lt.s32.totalorder %v869, 2
    %vm890 = vcmp.lt.s32.totalorder %v869, 3
    %vm891 = vcmp.lt.s32.totalorder %v869, 4
    %v892 = vsel %vm888, %v872, %v875
    %v893 = vsel %vm891, %v881, 2102212464
    %v894 = vsel %vm890, %v878, %v893
    %v895 = vsel %vm889, %v892, %v894
    %v896 = vsel %vm888, %v875, %v878
    %v897 = vsel %vm891, %v884, 920167782
    %v898 = vsel %vm890, %v881, %v897
    %v899 = vsel %vm889, %v896, %v898
    %v900 = vsel %vm888, %v878, %v881
    %v901 = vsel %vm891, %v887, 1326507024
    %v902 = vsel %vm890, %v884, %v901
    %v903 = vsel %vm889, %v900, %v902
    %v904 = vshll.u32 %v864, 8
    %v905 = vmul.u32.u64.compose %v904, %v903
    %v906 = vextract.low.u32 %v905
    %v907 = vextract.high.u32 %v905
    %v908 = vmul.u32.u64.compose %v904, %v899
    %v909 = vextract.low.u32 %v908
    %v910 = vextract.high.u32 %v908
    %v911 = vmul.u32 %v904, %v895
    %v912 = vadd.s32 %v907, %v909
    %vm913 = vc.u32 %v907, %v909
    %v914 = vadd.s32 %v910, 1
    %v915 = vsel %vm913, %v914, %v910
    %v916 = vadd.s32 %v911, %v915
    %v917 = vadd.s32 %v916, 536870912
    %v918 = vshrl.u32 %v917, 30
    %v919 = vshll.u32 %v918, 30
    %v920 = vsub.s32 %v916, %v919
    %vm921 = vcmp.lt.s32.totalorder %v920, 0
    %v922 = vsub.s32 0, %v920
    %v923 = vsel %vm921, %v922, %v920
    %v924 = vclz %v923
    %v925 = vsub.s32 %v924, 2
    %vm926 = vcmp.gt.s32.totalorder 0, %v925
    %v927 = vsel %vm926, 0, %v925
    %v928 = vsub.s32 32, %v927
    %v929 = vshll.u32 %v920, %v927
    %v930 = vshrl.u32 %v912, %v928
    %v931 = vor.u32 %v929, %v930
    %v932 = vsub.s32 4294967266, %v927
    %v933 = vadd.s32 %v932, 127
    %v934 = vshll.u32 %v933, 23
    %v935 = vor.u32 4788187, %v934
    %v936 = vand.u32 2147483647, %v935
    %v938 = vcvt.s32.f32 %v931
    %v939 = vmul.f32 %v938, %v936
    %v940 = vxor.u32 %v939, 2147483648
    %v941 = vsel %vm858, %v940, %v939
    %v942 = vsub.s32 4, %v918
    %v943 = vsel %vm858, %v942, %v918
    %v944 = vsel %vm857, %v749, %v941
    %v945 = vsel %vm857, 0, %v943
    %v946 = vcosq.f32.pop %v944
    %v947 = vsinq.f32.pop %v944
    %vm948 = vweird.f32 %v749
    %v949 = vadd.s32 %v945, 3
    %v950 = vand.u32 %v949, 3
    %vm951 = vcmp.lt.s32.totalorder %v950, 2
    %vm952 = vcmp.eq.s32.totalorder %v950, 0
    %v953 = vxor.u32 %v947, 2147483648
    %v954 = vsel %vm952, %v946, %v953
    %vm955 = vcmp.eq.s32.totalorder %v950, 2
    %v956 = vxor.u32 %v946, 2147483648
    %v957 = vsel %vm955, %v956, %v947
    %v958 = vsel %vm951, %v954, %v957
    %v959 = vsel %vm948, nan, %v958
    %v960 = vadd.f32 %v540, %v855
    %v961 = vadd.f32 %v644, %v959
    %v962 = vsel %vm645, %v960, 0.0
    %v963 = vrot.slane %v962, 4
    %v964 = vadd.f32 %v962, %v963
    %v965 = vrot.slane %v964, 2
    %v966 = vadd.f32 %v964, %v965
    %v967 = vrot.slane %v966, 1
    %v968 = vadd.f32 %v966, %v967
    %v969 = vsel %vm645, %v961, 0.0
    %v970 = vrot.slane %v969, 4
    %v971 = vadd.f32 %v969, %v970
    %v972 = vrot.slane %v971, 2
    %v973 = vadd.f32 %v971, %v972
    %v974 = vrot.slane %v973, 1
    %v975 = vadd.f32 %v973, %v974
    %v976 = vmul.f32 %v968, 0.125
    %v977 = vmul.f32 %v975, 0.125
    %v978 = vld [vmem:[%s7] sm:$0xf]
    %v979 = vld [vmem:[%s7 + $0x4] sm:$0xf]
    %v980 = vld [vmem:[%s7 + $0x8] sm:$0xf]
    %v981 = vld [vmem:[%s7 + $0xc] sm:$0xf]
    %v982 = vld [vmem:[%s7 + $0x10] sm:$0xf]
    %v983 = vld [vmem:[%s7 + $0x14] sm:$0xf]
    %v984 = vld [vmem:[%s8] sm:$0x1]
    %v985 = vpack.c.bf16 %v976, %v976
    %v986 = vpack.c.bf16 %v977, %v977
    %v988 = vlaneseq
    %v989 = vshrl.u32 %v988, 7
    %v990 = vsub.s32 0, %v989
    %v991 = vrot.slane %v984, %v990
    %v995 = vunpack.c.l.b16 %v985
    %v996 = vunpack.c.l.b16 %v986
    %vm997 = vcmask 1041409
    %v998 = vsel %vm997, %v996, %v995
    %v999 = vpack.c.b16 %v998, %v998
    %v1006 = vunpack.c.l.b16 %v978
    %v1007 = vunpack.c.l.b16 %v979
    %v1008 = vunpack.c.l.b16 %v980
    %v1009 = vunpack.c.l.b16 %v981
    %v1010 = vunpack.c.l.b16 %v982
    %v1011 = vunpack.c.l.b16 %v983
    %v1012 = vpack.c.b16 %v1007, %v1006
    %v1013 = vpack.c.b16 %v1009, %v1008
    %v1014 = vpack.c.b16 %v1011, %v1010
    %v1019 = vsel %vm645, %v999, 0
    %1021 = vmatprep.subr.bf16.mxu0 0
    %1022 = vmatpush1.bf16.msra.mxu0 %v1012
    %1023 = vmatprep.subr.bf16.mxu0 0
    %1024 = vmatpush1.bf16.msra.mxu0 %v1013
    %1025 = vmatprep.subr.bf16.mxu0 0
    %1026 = vmatpush1.bf16.msra.mxu0 %v1014
    %1027 = vmatprep.subr.bf16.mxu0 0
    %1028 = vmatpush1.bf16.msra.mxu0 0
    %1029 = vmatprep.subr.bf16.mxu0 0
    %1030 = vmatpush1.bf16.msra.mxu0 0
    %1031 = vmatprep.subr.bf16.mxu0 0
    %1032 = vmatpush1.bf16.msra.mxu0 0
    %1033 = vmatprep.subr.bf16.mxu0 0
    %1034 = vmatpush1.bf16.msra.mxu0 0
    %1035 = vmatprep.subr.bf16.mxu0 0
    %1036 = vmatpush1.bf16.msra.mxu0 0
    %1037 = vmatprep.subr.bf16.mxu0 0
    %1038 = vmatpush1.bf16.msra.mxu0 0
    %1039 = vmatprep.subr.bf16.mxu0 0
    %1040 = vmatpush1.bf16.msra.mxu0 0
    %1041 = vmatprep.subr.bf16.mxu0 0
    %1042 = vmatpush1.bf16.msra.mxu0 0
    %1043 = vmatprep.subr.bf16.mxu0 0
    %1044 = vmatpush1.bf16.msra.mxu0 0
    %1045 = vmatprep.subr.bf16.mxu0 0
    %1046 = vmatpush1.bf16.msra.mxu0 0
    %1047 = vmatprep.subr.bf16.mxu0 0
    %1048 = vmatpush1.bf16.msra.mxu0 0
    %1049 = vmatprep.subr.bf16.mxu0 0
    %1050 = vmatpush1.bf16.msra.mxu0 0
    %1051 = vmatprep.subr.bf16.mxu0 0
    %1052 = vmatpush1.bf16.msra.mxu0 0
    %1053 = vmatprep.mubr.bf16.mxu0 0
    %1054 = vmatmul.mubr.bf16.gmra.mrb[0].mxu0 %v1019
    %v1055 = vpop.f32.mrb[0].mxu0
    %v1056 = vadd.f32 %v991, %v1055
    %v1057 = vpop.f32.mrb[0].mxu0
    %v1058 = vpop.f32.mrb[0].mxu0
    %v1059 = vpop.f32.mrb[0].mxu0
    %1060 = vdwg.mxu0
    %1061 = vst [vmem:[#allocation2] sm:$0x3] %v1056
    // Predicated region
    $region38: #{tpu_custom_call.1} parent=1 // pred_check
      _
    $region39: #{tpu_custom_call.1} parent=1 // pred_check_branch
      %1063 = sbr.rel (0) target = $region41
    $region40: #{tpu_custom_call.1} parent=1 // pred_region
      %s1065 = ssub.s32 32, 32
      %1066 = vsyncadd [#allocation3], %s1065
      %s1068 = sshll.u32 [#allocation2], 4
      %s1069 = int_to_ptr.vmem [resolvable:$true] %s1068
      %1071 = dma.vmem_to_hbm [thread:$0]  %s1069, 32, %s9, [#allocation3]
    $region41: #{tpu_custom_call.1} parent=1 // pred_fallthru
      _
    // Predicated region
    $region42: #{tpu_custom_call.1} parent=1 // pred_check
      _
    $region43: #{tpu_custom_call.1} parent=1 // pred_check_branch
      %1073 = sbr.rel (0) target = $region45
    $region44: #{tpu_custom_call.1} parent=1 // pred_region
      %1074 = dma.done [#allocation3], 32
    $region45: #{tpu_custom_call.1} parent=1 // pred_fallthru
      _
    %1075 = vsyncpa [#allocation3], 1

</llo_original>
